<compile_context>
chip_gen: v7x
topology: tpu7x:2x2x1
jax: 0.10.0
libtpu: 0.0.40
codegen_flags: <defaults>
</compile_context>

<pallas_src>
import functools

import numpy as np
import jax
import jax.numpy as jnp
from jax.experimental import pallas as pl
from jax.experimental.pallas import tpu as pltpu

_LANE = 512             # lane-dense last dim (multiple of 128 -> unmasked vst)
_SUBLANE = 8            # f32/i32 sublane quantum
_MAX_BLOCK_ROWS = 1024  # (1024, 512) i32 = 2 MiB per output buffer


def _round_up(x, m):
    return (x + m - 1) // m * m


def _edge_drop_mask_kernel(seed_ref, mask_ref, *, threshold, block_rows, lane):
    """Writes the keep mask ({0,1} int32) for one (block_rows, lane) edge tile."""
    r = pl.program_id(0)

    # Global edge index of every element of this tile.
    row = jax.lax.broadcasted_iota(jnp.int32, (block_rows, lane), 0)
    col = jax.lax.broadcasted_iota(jnp.int32, (block_rows, lane), 1)
    gidx = ((r * block_rows + row) * lane + col).astype(jnp.uint32)

    # Stateless counter-based hash of (edge index, seed) -> uniform uint32.
    # Per-tile streams are automatically independent (index-based), so the
    # grid axis is safe to shard "parallel" across TensorCores.
    seed_u = seed_ref[0].astype(jnp.uint32)
    x = gidx * jnp.uint32(0x9E3779B1) + seed_u * jnp.uint32(0x85EBCA77)
    x = x ^ (x >> 16)
    x = x * jnp.uint32(0x7FEB352D)
    x = x ^ (x >> 15)
    x = x * jnp.uint32(0x846CA68B)
    x = x ^ (x >> 16)

    # keep with probability keep_rate: one bias-free unsigned compare.
    keep = x < jnp.uint32(threshold)
    # TODO(synk): int8 / bit-packed mask output ((32,128)-aligned tiles) would
    #             cut the (only) HBM write stream by a further 4-32x.
    mask_ref[...] = keep.astype(jnp.int32)


def edge_drop_mask(num_edges, keep_rate, seed):
    """Pallas kernel wrapper: returns an int32[num_edges] keep mask on device."""
    rows = max(_round_up(pl.cdiv(num_edges, _LANE), _SUBLANE), _SUBLANE)
    block_rows = min(rows, _MAX_BLOCK_ROWS)
    rows = _round_up(rows, block_rows)
    grid = (rows // block_rows,)

    # keep_rate is a Python float at call time -> bake the uint32 threshold in
    # (drops the float pipeline and the SMEM keep_rate scalar entirely).
    threshold = min(int(round(float(keep_rate) * (1 << 32))), (1 << 32) - 1)

    kernel = functools.partial(
        _edge_drop_mask_kernel,
        threshold=threshold, block_rows=block_rows, lane=_LANE)

    mask2d = pl.pallas_call(
        kernel,
        out_shape=jax.ShapeDtypeStruct((rows, _LANE), jnp.int32),
        grid_spec=pltpu.PrefetchScalarGridSpec(
            num_scalar_prefetch=1,   # seed in SMEM: new seed != recompile
            grid=grid,
            in_specs=[],
            out_specs=pl.BlockSpec((block_rows, _LANE), lambda r, seed: (r, 0)),
        ),
        compiler_params=pltpu.CompilerParams(
            dimension_semantics=("parallel",),  # shard edge tiles across TCs (v7x)
        ),
    )(jnp.asarray([seed], dtype=jnp.int32))

    return mask2d.reshape(-1)[:num_edges]


def sp_adj_edge_drop(idxs, vals, adj_shape, keep_rate, seed=0):
    """JAX/Pallas equivalent of SpAdjEdgeDrop.forward.

    idxs: int32[2, E], vals: float32[E], adj_shape: (N, N).
    Returns (new_idxs, new_vals, adj_shape) -- a compacted COO sparse tensor,
    like the torch module.  The compaction (cumsum + scatter) runs on device;
    only the scalar kept-edge count is synced to the host for the final
    dynamic-shape slice.
    """
    if keep_rate == 1.0:
        return idxs, vals, adj_shape

    E = vals.shape[0]
    mask = edge_drop_mask(E, keep_rate, seed)        # int32[E], on device

    keep = mask.astype(bool)
    positions = jnp.cumsum(mask) - 1                 # destination slot of kept edges
    count = jnp.sum(mask)
    dest = jnp.where(keep, positions, E)             # dropped edges -> OOB, discarded

    packed_vals = jnp.zeros((E,), vals.dtype).at[dest].set(vals, mode="drop")
    packed_idxs = (jnp.zeros((E, 2), idxs.dtype)
                   .at[dest].set(idxs.T, mode="drop").T)

    # TODO(synk): dynamic-shape output needs one scalar host sync; downstream
    #             device code can instead consume (packed_*, count) directly.
    n = int(count)
    return packed_idxs[:, :n], packed_vals[:n], adj_shape


if __name__ == "__main__":
    key = jax.random.PRNGKey(0)
    k_idx, k_val = jax.random.split(key)

    N = 16          # adjacency is N x N
    E = 300         # number of nonzero edges
    keep_rate = 0.7

    idxs = jax.random.randint(k_idx, (2, E), 0, N, dtype=jnp.int32)
    vals = jax.random.uniform(k_val, (E,), dtype=jnp.float32) + 0.1

    # Raw kernel output (keep mask) for sanity checks.
    mask = jax.block_until_ready(edge_drop_mask(E, keep_rate, seed=42))

    # Full forward pass (mask kernel + on-device compaction).
    new_idxs, new_vals, shape = sp_adj_edge_drop(idxs, vals, (N, N), keep_rate, seed=42)
    jax.block_until_ready((new_idxs, new_vals))

    mask_np = np.asarray(mask)
    keep_np = mask_np.astype(bool)
    vals_np = np.asarray(vals)
    idxs_np = np.asarray(idxs)
    k = int(keep_np.sum())

    assert set(np.unique(mask_np)).issubset({0, 1})
    assert shape == (N, N)
    assert new_vals.shape == (k,) and new_idxs.shape == (2, k)
    # kept edges preserve their value and indices, in order (== vals[mask])
    assert np.allclose(np.asarray(new_vals), vals_np[keep_np])
    assert np.array_equal(np.asarray(new_idxs), idxs_np[:, keep_np])
    # empirical keep fraction close to keep_rate (deterministic for this seed)
    assert abs(k / E - keep_rate) < 0.15
    # keep_rate == 1.0 fast path returns the inputs untouched
    i2, v2, _ = sp_adj_edge_drop(idxs, vals, (N, N), 1.0)
    assert v2 is vals and i2 is idxs

    print("KERNEL_OK")
</pallas_src>

<mosaic_0001>
module attributes {stable_mosaic.version = 11 : i64} {
  func.func @_edge_drop_mask_kernel(%arg0: i32, %arg1: memref<1xi32, #tpu.memory_space<smem>>, %arg2: memref<8x512xi32, #tpu.memory_space<vmem>>) attributes {dimension_semantics = [#tpu.dimension_semantics<parallel>], iteration_bounds = array<i64: 1>, scalar_prefetch = 1 : i64, scratch_operands = 0 : i64, tpu.core_type = #tpu.core_type<tc>, window_params = [{transform_indices = @transform_0, window_bounds = array<i64: 8, 512>}]} {
    %0 = tpu.iota {dimensions = array<i32: 0>} : vector<8x512xi32>
    %1 = tpu.iota {dimensions = array<i32: 1>} : vector<8x512xi32>
    %c8_i32 = arith.constant 8 : i32
    %2 = arith.muli %arg0, %c8_i32 : i32
    %3 = vector.broadcast %2 : i32 to vector<8x512xi32>
    %4 = arith.addi %3, %0 : vector<8x512xi32>
    %c512_i32 = arith.constant 512 : i32
    %5 = vector.broadcast %c512_i32 : i32 to vector<8x512xi32>
    %6 = arith.muli %4, %5 : vector<8x512xi32>
    %7 = arith.addi %6, %1 : vector<8x512xi32>
    %c0 = arith.constant 0 : index
    %8 = memref.load %arg1[%c0] : memref<1xi32, #tpu.memory_space<smem>>
    %c-1640531535_i32 = arith.constant -1640531535 : i32
    %9 = vector.broadcast %c-1640531535_i32 : i32 to vector<8x512xi32>
    %10 = arith.muli %7, %9 : vector<8x512xi32>
    %c-2048144777_i32 = arith.constant -2048144777 : i32
    %11 = arith.muli %8, %c-2048144777_i32 : i32
    %12 = vector.broadcast %11 : i32 to vector<8x512xi32>
    %13 = arith.addi %10, %12 : vector<8x512xi32>
    %c16_i32 = arith.constant 16 : i32
    %14 = vector.broadcast %c16_i32 : i32 to vector<8x512xi32>
    %15 = arith.shrui %13, %14 : vector<8x512xi32>
    %16 = arith.xori %13, %15 : vector<8x512xi32>
    %c2146121005_i32 = arith.constant 2146121005 : i32
    %17 = vector.broadcast %c2146121005_i32 : i32 to vector<8x512xi32>
    %18 = arith.muli %16, %17 : vector<8x512xi32>
    %c15_i32 = arith.constant 15 : i32
    %19 = vector.broadcast %c15_i32 : i32 to vector<8x512xi32>
    %20 = arith.shrui %18, %19 : vector<8x512xi32>
    %21 = arith.xori %18, %20 : vector<8x512xi32>
    %c-2073254261_i32 = arith.constant -2073254261 : i32
    %22 = vector.broadcast %c-2073254261_i32 : i32 to vector<8x512xi32>
    %23 = arith.muli %21, %22 : vector<8x512xi32>
    %c16_i32_0 = arith.constant 16 : i32
    %24 = vector.broadcast %c16_i32_0 : i32 to vector<8x512xi32>
    %25 = arith.shrui %23, %24 : vector<8x512xi32>
    %26 = arith.xori %23, %25 : vector<8x512xi32>
    %c-1288490189_i32 = arith.constant -1288490189 : i32
    %27 = vector.broadcast %c-1288490189_i32 : i32 to vector<8x512xi32>
    %28 = arith.cmpi ult, %26, %27 : vector<8x512xi32>
    %29 = arith.extui %28 : vector<8x512xi1> to vector<8x512xi32>
    %c0_1 = arith.constant 0 : index
    %c0_2 = arith.constant 0 : index
    %30 = vector.load %arg2[%c0_1, %c0_2] : memref<8x512xi32, #tpu.memory_space<vmem>>, vector<8x512xi32>
    tpu.vector_store %arg2[%c0_1, %c0_2], %29 {strides = array<i32>} : memref<8x512xi32, #tpu.memory_space<vmem>>, vector<8x512xi32>,
    return
  }
  func.func @transform_0(%arg0: i32, %arg1: memref<1xi32, #tpu.memory_space<smem>>) -> (i32, i32) {
    %c0_i32 = arith.constant 0 : i32
    %c0_i32_0 = arith.constant 0 : i32
    return %arg0, %c0_i32 : i32, i32
  }
}

</mosaic_0001>

<llo_original>
// kernel: tpu_custom_call.1
$region0: #{tpu_custom_call.1}
  #allocation0 [shape = 'u32[]', space=smem, size = 0x4, offset = 0x4, fixed_abs, tag = 'smem constant byte address 0x4 - core index']
  #allocation1 [shape = 'u32[144,128]{1,0:T(1,128)}', space=vmem, size = 0x12000, scoped, tag = 'internal scratch']
  #allocation2 [shape = 's32[1]{0}', space=sflag, size = 0x4, scoped, tag = 'scoped memory for tpu_custom_call.1']
  #allocation3 [shape = 's32[1]{0:T(128)S(6)}', space=smem, size = 0x200, scoped, tag = 'prefetched SMEM operand 0']
  %s0 = inlined_call_operand.<no memory space> [shape: s32[1], index: 0, kind: input, shape index: {}]
  %s1 = inlined_call_operand.hbm [shape: s32[8,512], index: 1, kind: output, shape index: {}]
  %s2 = sld [smem:[#allocation0]]
  $region10: #{tpu_custom_call.1} parent=0
    _
  %s4 = ssub.s32 1, %s2
  %s5 = scalar_select 0, %s4, %s2
  %6 = sst [smem:[#allocation3]] %s0
  $region1: #{tpu_custom_call.1} parent=0
    #allocation4 [shape = 'u8[16384]{0}', space=vmem, size = 0x4000, scoped, tag = 'output window, operand 0, single buffered']
    #allocation5 [shape = 's32[1]{0}', space=sflag, size = 0x4, scoped, tag = 'scoped memory for tpu_custom_call.1']
    %7 = vsyncpa [#allocation5], 0
    %v8 = vlaneseq
    %v9 = vshrl.u32 %v8, 7
    %v10 = vlaneseq
    %v11 = vand.u32 %v10, 127
    %v12 = vadd.s32 %v11, 128
    %v13 = vadd.s32 %v11, 256
    %v14 = vadd.s32 %v11, 384
    %s15 = smul.u32 0, 8
    %v16 = vstv %s15
    %v17 = vadd.s32 %v16, %v9
    %v18 = vmul.u32 %v17, 512
    %v19 = vadd.s32 %v18, %v11
    %v20 = vadd.s32 %v18, %v12
    %v21 = vadd.s32 %v18, %v13
    %v22 = vadd.s32 %v18, %v14
    %s23 = sld [smem:[#allocation3]]
    %v24 = vmul.u32 %v19, 2654435761
    %v25 = vmul.u32 %v20, 2654435761
    %v26 = vmul.u32 %v21, 2654435761
    %v27 = vmul.u32 %v22, 2654435761
    %s28 = smul.u32 %s23, 2246822519
    %v29 = vstv %s28
    %v30 = vadd.s32 %v24, %v29
    %v31 = vadd.s32 %v25, %v29
    %v32 = vadd.s32 %v26, %v29
    %v33 = vadd.s32 %v27, %v29
    %v34 = vshrl.u32 %v30, 16
    %v35 = vshrl.u32 %v31, 16
    %v36 = vshrl.u32 %v32, 16
    %v37 = vshrl.u32 %v33, 16
    %v38 = vxor.u32 %v30, %v34
    %v39 = vxor.u32 %v31, %v35
    %v40 = vxor.u32 %v32, %v36
    %v41 = vxor.u32 %v33, %v37
    %v42 = vmul.u32 %v38, 2146121005
    %v43 = vmul.u32 %v39, 2146121005
    %v44 = vmul.u32 %v40, 2146121005
    %v45 = vmul.u32 %v41, 2146121005
    %v46 = vshrl.u32 %v42, 15
    %v47 = vshrl.u32 %v43, 15
    %v48 = vshrl.u32 %v44, 15
    %v49 = vshrl.u32 %v45, 15
    %v50 = vxor.u32 %v42, %v46
    %v51 = vxor.u32 %v43, %v47
    %v52 = vxor.u32 %v44, %v48
    %v53 = vxor.u32 %v45, %v49
    %v54 = vmul.u32 %v50, 2221713035
    %v55 = vmul.u32 %v51, 2221713035
    %v56 = vmul.u32 %v52, 2221713035
    %v57 = vmul.u32 %v53, 2221713035
    %v58 = vshrl.u32 %v54, 16
    %v59 = vshrl.u32 %v55, 16
    %v60 = vshrl.u32 %v56, 16
    %v61 = vshrl.u32 %v57, 16
    %v62 = vxor.u32 %v54, %v58
    %v63 = vxor.u32 %v55, %v59
    %v64 = vxor.u32 %v56, %v60
    %v65 = vxor.u32 %v57, %v61
    %vm66 = vcmp.lt.u32.totalorder %v62, 3006477107
    %vm67 = vcmp.lt.u32.totalorder %v63, 3006477107
    %vm68 = vcmp.lt.u32.totalorder %v64, 3006477107
    %vm69 = vcmp.lt.u32.totalorder %v65, 3006477107
    %v70 = vsel %vm66, 1, 0
    %v71 = vsel %vm67, 1, 0
    %v72 = vsel %vm68, 1, 0
    %v73 = vsel %vm69, 1, 0
    %74 = vst [vmem:[#allocation4] sm:$0xff] %v70
    %75 = vst [vmem:[#allocation4 + $0x8] sm:$0xff] %v71
    %76 = vst [vmem:[#allocation4 + $0x10] sm:$0xff] %v72
    %77 = vst [vmem:[#allocation4 + $0x18] sm:$0xff] %v73
    // Predicated region
    $region2: #{tpu_custom_call.1} parent=1 // pred_check
      _
    $region3: #{tpu_custom_call.1} parent=1 // pred_check_branch
      %79 = sbr.rel (0) target = $region5
    $region4: #{tpu_custom_call.1} parent=1 // pred_region
      %s81 = ssub.s32 512, 512
      %82 = vsyncadd [#allocation5], %s81
      %s84 = sshll.u32 [#allocation4], 4
      %s85 = int_to_ptr.vmem [resolvable:$true] %s84
      %87 = dma.vmem_to_hbm [thread:$0]  %s85, 512, %s1, [#allocation5]
    $region5: #{tpu_custom_call.1} parent=1 // pred_fallthru
      _
    // Predicated region
    $region6: #{tpu_custom_call.1} parent=1 // pred_check
      _
    $region7: #{tpu_custom_call.1} parent=1 // pred_check_branch
      %89 = sbr.rel (0) target = $region9
    $region8: #{tpu_custom_call.1} parent=1 // pred_region
      %90 = dma.done [#allocation5], 512
    $region9: #{tpu_custom_call.1} parent=1 // pred_fallthru
      _
    %91 = vsyncpa [#allocation5], 1

</llo_original>
